<compile_context>
chip_gen: v7x
topology: tpu7x:2x2x1
jax: 0.10.0
libtpu: 0.0.40
codegen_flags: <defaults>
</compile_context>

<pallas_src>
import functools

import jax
import jax.numpy as jnp
from jax.experimental import pallas as pl
from jax.experimental.pallas import tpu as pltpu

B, T, V, E, H = 2, 8, 20, 16, 32   # batch, seq, vocab, embed_dim, hidden_dim


def rnn_classifier_kernel(idl_ref, proj_ref, whh_ref, aux_ref, out_ref):
    """Embedding -> packed LSTM -> Linear, fused into one kernel.

    idl_ref  : ((T+1)*BP, 1) int32  rows [0,T*BP) time-major token ids
                                    rows [T*BP,(T+1)*BP) sequence lengths
    proj_ref : (V, 4H)  f32   emb_table @ W_ih^T, i/f/o columns pre-scaled 0.5
    whh_ref  : (4H, 4H) f32   W_hh^T (scaled) in rows [0,H), zeros below
    aux_ref  : (8, 4H)  f32   row0 fused bias (scaled), row1 fc_w zero-padded,
                              row2 lane0 fc_b
    out_ref  : (BP, 1)  f32   logits (rows >= B are padding)
    """
    n_bp = out_ref.shape[0]                     # padded batch (multiple of 8)
    n_steps = idl_ref.shape[0] // n_bp - 1      # T
    vocab = proj_ref.shape[0]
    hid4 = whh_ref.shape[1]                     # 4H (full 128-lane width)
    hid = hid4 // 4

    ids = idl_ref[0:n_steps * n_bp, :]                          # (T*BP, 1)
    lengths = idl_ref[n_steps * n_bp:(n_steps + 1) * n_bp, :]   # (BP, 1)

    # ---- hoisted input projection fused with the embedding gather ---------
    # xw[t*BP + b] = onehot(ids[t,b]) @ (emb @ W_ih_scaled^T) + bias_scaled
    # NOTE: out-of-range ids (>= V) give an all-zero one-hot row (zero
    # embedding) instead of an error, unlike torch.nn.Embedding.
    iota_v = jax.lax.broadcasted_iota(jnp.int32, (n_steps * n_bp, vocab), 1)
    onehot = (ids == iota_v).astype(jnp.float32)                # (T*BP, V)
    bias = aux_ref[0:1, :]                                      # (1, 4H)
    xw = jnp.dot(onehot, proj_ref[...],
                 preferred_element_type=jnp.float32) + bias     # (T*BP, 4H)

    # bf16 operands for the per-step MXU dot (f32 accumulation).
    whh_bf16 = whh_ref[...].astype(jnp.bfloat16)                # (4H, 4H)

    # State carried at full 128-lane width; only lanes [0,H) are meaningful.
    h = jnp.zeros((n_bp, hid4), jnp.float32)
    c = jnp.zeros((n_bp, hid4), jnp.float32)

    # ---- fully unrolled recurrence (small static trip count) --------------
    for t in range(n_steps):
        # tile-aligned (8, 128) slice; junk lanes of h hit zero rows of whh.
        gates = xw[t * n_bp:(t + 1) * n_bp, :] + jnp.dot(
            h.astype(jnp.bfloat16), whh_bf16,
            preferred_element_type=jnp.float32)                 # (BP, 4H)
        tg = jnp.tanh(gates)          # single EUP pass over the whole vreg
        sg = 0.5 * tg + 0.5           # VPU: sigmoid of unscaled i/f/o columns
        # align f/g/o quarters to lanes [0,H) via XLU rolls (free slot)
        f_al = pltpu.roll(sg, shift=3 * hid, axis=1)
        g_al = pltpu.roll(tg, shift=2 * hid, axis=1)
        o_al = pltpu.roll(sg, shift=1 * hid, axis=1)
        c_new = f_al * c + sg * g_al            # lanes [0,H) valid, rest junk
        h_new = o_al * jnp.tanh(c_new)          # 2nd (and last) EUP push
        # packed-sequence semantics: state freezes once t >= lengths[b]
        m_t = t < lengths                                       # (BP, 1) bool
        c = jnp.where(m_t, c_new, c)
        h = jnp.where(m_t, h_new, h)

    # ---- fc (H -> 1): VPU multiply + lane reduction ------------------------
    # fc_w row is zero beyond lane H, so junk lanes of h contribute nothing.
    fc_w = aux_ref[1:2, :]                                      # (1, 4H)
    fc_b = aux_ref[2:3, 0:1]                                    # (1, 1)
    # TODO(synk): if the output ever grows beyond one lane, write logits into
    # a lane-dense (multiple-of-128) slab and slice in the wrapper.
    out_ref[...] = jnp.sum(h * fc_w, axis=-1, keepdims=True) + fc_b


def rnn_classifier_forward(x, lengths, params):
    bsz, seq = x.shape
    hid = params["w_hh"].shape[1]
    h4 = 4 * hid
    bp = ((bsz + 7) // 8) * 8          # pad batch to a full sublane tile

    # Pre-scale i/f/o gate columns by 0.5 so sigmoid(x) = 0.5*tanh(x/2) + 0.5
    # can be recovered from a single tanh over the full gate vreg.
    gate_scale = jnp.concatenate([
        jnp.full((hid,), 0.5), jnp.full((hid,), 0.5),
        jnp.ones((hid,)), jnp.full((hid,), 0.5)]).astype(jnp.float32)  # (4H,)

    wih_t = params["w_ih"].T * gate_scale                       # (E, 4H)
    proj = params["embedding"] @ wih_t                          # (V, 4H)
    bias = (params["b_ih"] + params["b_hh"]) * gate_scale       # (4H,)

    whh_pad = jnp.zeros((h4, h4), jnp.float32)
    whh_pad = whh_pad.at[:hid, :].set(params["w_hh"].T * gate_scale)

    aux = jnp.zeros((8, h4), jnp.float32)
    aux = aux.at[0, :].set(bias)
    aux = aux.at[1, :hid].set(params["fc_w"][0])
    aux = aux.at[2, 0].set(params["fc_b"][0])

    # ids (time-major, batch padded with token 0) and lengths packed into one
    # int32 column so the kernel takes 4 inputs instead of 8.
    ids_pad = jnp.zeros((bp, seq), jnp.int32).at[:bsz, :].set(x.astype(jnp.int32))
    len_pad = jnp.zeros((bp,), jnp.int32).at[:bsz].set(lengths.astype(jnp.int32))
    idl = jnp.concatenate(
        [jnp.transpose(ids_pad, (1, 0)).reshape(seq * bp, 1),
         len_pad.reshape(bp, 1)], axis=0)                       # ((T+1)*BP, 1)

    vmem = functools.partial(pl.BlockSpec, memory_space=pltpu.MemorySpace.VMEM)
    # TODO(synk): when scaling batch, add a leading grid axis over batch tiles
    # with dimension_semantics=("parallel",) (2 TCs on v7x) and size the
    # per-core footprint against v7x's 64 MiB VMEM, not v5e/v6e's 128 MiB.
    out = pl.pallas_call(
        rnn_classifier_kernel,
        out_shape=jax.ShapeDtypeStruct((bp, 1), jnp.float32),
        in_specs=[vmem()] * 4,
        out_specs=vmem(),
    )(idl, proj, whh_pad, aux)
    return out[:bsz, 0]                                         # (B,)


def reference_forward(x, lengths, params):
    # Pure-JAX f32 reference of the same semantics (for a correctness check).
    bsz, seq = x.shape
    hid = params["w_hh"].shape[1]
    emb = jnp.take(params["embedding"], x, axis=0)
    h = jnp.zeros((bsz, hid), jnp.float32)
    c = jnp.zeros((bsz, hid), jnp.float32)
    for t in range(seq):
        xt = emb[:, t]
        gates = (xt @ params["w_ih"].T + h @ params["w_hh"].T
                 + params["b_ih"] + params["b_hh"])
        i_g = jax.nn.sigmoid(gates[:, :hid])
        f_g = jax.nn.sigmoid(gates[:, hid:2 * hid])
        g_g = jnp.tanh(gates[:, 2 * hid:3 * hid])
        o_g = jax.nn.sigmoid(gates[:, 3 * hid:])
        c_new = f_g * c + i_g * g_g
        h_new = o_g * jnp.tanh(c_new)
        m = (t < lengths)[:, None]
        c = jnp.where(m, c_new, c)
        h = jnp.where(m, h_new, h)
    out = h @ params["fc_w"].T + params["fc_b"]
    return out[:, 0]


def init_params(key):
    ks = jax.random.split(key, 7)
    emb = 0.1 * jax.random.normal(ks[0], (V, E), jnp.float32)
    emb = emb.at[0].set(0.0)                    # padding_idx=0
    return {
        "embedding": emb,
        "w_ih": 0.1 * jax.random.normal(ks[1], (4 * H, E), jnp.float32),
        "w_hh": 0.1 * jax.random.normal(ks[2], (4 * H, H), jnp.float32),
        "b_ih": 0.1 * jax.random.normal(ks[3], (4 * H,), jnp.float32),
        "b_hh": 0.1 * jax.random.normal(ks[4], (4 * H,), jnp.float32),
        "fc_w": 0.1 * jax.random.normal(ks[5], (1, H), jnp.float32),
        "fc_b": 0.1 * jax.random.normal(ks[6], (1,), jnp.float32),
    }


if __name__ == "__main__":
    key = jax.random.PRNGKey(0)
    pkey, xkey = jax.random.split(key)
    params = init_params(pkey)

    lengths = jnp.array([8, 5], dtype=jnp.int32)                    # (B,)
    toks = jax.random.randint(xkey, (B, T), 1, V, dtype=jnp.int32)
    pad_mask = jnp.arange(T)[None, :] < lengths[:, None]
    x = jnp.where(pad_mask, toks, 0)                                # zero-padded ids

    # TODO(synk): bidirectional=True path (h_n[-2] ++ h_n[-1]) not implemented;
    # module default is unidirectional.
    out = jax.block_until_ready(rnn_classifier_forward(x, lengths, params))
    ref = reference_forward(x, lengths, params)
    assert out.shape == (B,)
    # Tolerance loosened slightly vs pure-f32: the per-step recurrence dot uses
    # bf16 MXU operands (f32 accumulation) per the perf review.
    assert jnp.allclose(out, ref, rtol=2e-2, atol=2e-2), (out, ref)
    print("KERNEL_OK")
</pallas_src>

<mosaic_0001>
module attributes {stable_mosaic.version = 11 : i64} {
  func.func @rnn_classifier_kernel(%arg0: memref<72x1xi32, #tpu.memory_space<vmem>>, %arg1: memref<20x128xf32, #tpu.memory_space<vmem>>, %arg2: memref<128x128xf32, #tpu.memory_space<vmem>>, %arg3: memref<8x128xf32, #tpu.memory_space<vmem>>, %arg4: memref<8x1xf32, #tpu.memory_space<vmem>>) attributes {dimension_semantics = [], scalar_prefetch = 0 : i64, scratch_operands = 0 : i64, tpu.core_type = #tpu.core_type<tc>} {
    %c0 = arith.constant 0 : index
    %c0_0 = arith.constant 0 : index
    %0 = vector.load %arg0[%c0, %c0_0] : memref<72x1xi32, #tpu.memory_space<vmem>>, vector<64x1xi32>
    %c64 = arith.constant 64 : index
    %c0_1 = arith.constant 0 : index
    %1 = vector.load %arg0[%c64, %c0_1] : memref<72x1xi32, #tpu.memory_space<vmem>>, vector<8x1xi32>
    %2 = tpu.iota {dimensions = array<i32: 1>} : vector<64x20xi32>
    %3 = vector.broadcast %0 : vector<64x1xi32> to vector<64x20xi32>
    %4 = arith.cmpi eq, %3, %2 : vector<64x20xi32>
    %5 = arith.extui %4 : vector<64x20xi1> to vector<64x20xi32>
    %6 = arith.sitofp %5 : vector<64x20xi32> to vector<64x20xf32>
    %c0_2 = arith.constant 0 : index
    %c0_3 = arith.constant 0 : index
    %7 = vector.load %arg3[%c0_2, %c0_3] : memref<8x128xf32, #tpu.memory_space<vmem>>, vector<1x128xf32>
    %c0_4 = arith.constant 0 : index
    %c0_5 = arith.constant 0 : index
    %8 = vector.load %arg1[%c0_4, %c0_5] : memref<20x128xf32, #tpu.memory_space<vmem>>, vector<20x128xf32>
    %cst = arith.constant dense<0.000000e+00> : vector<64x128xf32>
    %9 = tpu.matmul %6, %8, %cst {dimension_numbers = #tpu.dot_dimension_numbers<[1], [0], [0], [1], [0, 0, 1, 1], [], []>} : vector<64x20xf32>, vector<20x128xf32>, vector<64x128xf32> -> vector<64x128xf32>
    %10 = vector.broadcast %7 : vector<1x128xf32> to vector<64x128xf32>
    %11 = arith.addf %9, %10 : vector<64x128xf32>
    %c0_6 = arith.constant 0 : index
    %c0_7 = arith.constant 0 : index
    %12 = vector.load %arg2[%c0_6, %c0_7] : memref<128x128xf32, #tpu.memory_space<vmem>>, vector<128x128xf32>
    %13 = arith.truncf %12 : vector<128x128xf32> to vector<128x128xbf16>
    %cst_8 = arith.constant 0.000000e+00 : f32
    %14 = vector.broadcast %cst_8 : f32 to vector<8x128xf32>
    %cst_9 = arith.constant 0.000000e+00 : f32
    %15 = vector.broadcast %cst_9 : f32 to vector<8x128xf32>
    %16 = vector.extract_strided_slice %11 {offsets = [0, 0], sizes = [8, 128], strides = [1, 1]} : vector<64x128xf32> to vector<8x128xf32>
    %17 = arith.truncf %14 : vector<8x128xf32> to vector<8x128xbf16>
    %cst_10 = arith.constant dense<0.000000e+00> : vector<8x128xf32>
    %18 = tpu.matmul %17, %13, %cst_10 {dimension_numbers = #tpu.dot_dimension_numbers<[1], [0], [0], [1], [0, 0, 1, 1], [], []>} : vector<8x128xbf16>, vector<128x128xbf16>, vector<8x128xf32> -> vector<8x128xf32>
    %19 = arith.addf %16, %18 : vector<8x128xf32>
    %20 = math.tanh %19 : vector<8x128xf32>
    %cst_11 = arith.constant 5.000000e-01 : f32
    %21 = vector.broadcast %cst_11 : f32 to vector<8x128xf32>
    %22 = arith.mulf %21, %20 : vector<8x128xf32>
    %cst_12 = arith.constant 5.000000e-01 : f32
    %23 = vector.broadcast %cst_12 : f32 to vector<8x128xf32>
    %24 = arith.addf %22, %23 : vector<8x128xf32>
    %c96_i32 = arith.constant 96 : i32
    %25 = tpu.dynamic_rotate %24 by %c96_i32 dim 1 : vector<8x128xf32>, i32 -> vector<8x128xf32>
    %c64_i32 = arith.constant 64 : i32
    %26 = tpu.dynamic_rotate %20 by %c64_i32 dim 1 : vector<8x128xf32>, i32 -> vector<8x128xf32>
    %c32_i32 = arith.constant 32 : i32
    %27 = tpu.dynamic_rotate %24 by %c32_i32 dim 1 : vector<8x128xf32>, i32 -> vector<8x128xf32>
    %28 = arith.mulf %25, %15 : vector<8x128xf32>
    %29 = arith.mulf %24, %26 : vector<8x128xf32>
    %30 = arith.addf %28, %29 : vector<8x128xf32>
    %31 = math.tanh %30 : vector<8x128xf32>
    %32 = arith.mulf %27, %31 : vector<8x128xf32>
    %c0_i32 = arith.constant 0 : i32
    %33 = vector.broadcast %c0_i32 : i32 to vector<8x1xi32>
    %34 = arith.cmpi sgt, %1, %33 : vector<8x1xi32>
    %35 = vector.shape_cast %34 : vector<8x1xi1> to vector<8x1xi1>
    %36 = vector.broadcast %35 : vector<8x1xi1> to vector<8x128xi1>
    %37 = arith.select %36, %30, %15 : vector<8x128xi1>, vector<8x128xf32>
    %38 = vector.shape_cast %34 : vector<8x1xi1> to vector<8x1xi1>
    %39 = vector.broadcast %38 : vector<8x1xi1> to vector<8x128xi1>
    %40 = arith.select %39, %32, %14 : vector<8x128xi1>, vector<8x128xf32>
    %41 = vector.extract_strided_slice %11 {offsets = [8, 0], sizes = [8, 128], strides = [1, 1]} : vector<64x128xf32> to vector<8x128xf32>
    %42 = arith.truncf %40 : vector<8x128xf32> to vector<8x128xbf16>
    %cst_13 = arith.constant dense<0.000000e+00> : vector<8x128xf32>
    %43 = tpu.matmul %42, %13, %cst_13 {dimension_numbers = #tpu.dot_dimension_numbers<[1], [0], [0], [1], [0, 0, 1, 1], [], []>} : vector<8x128xbf16>, vector<128x128xbf16>, vector<8x128xf32> -> vector<8x128xf32>
    %44 = arith.addf %41, %43 : vector<8x128xf32>
    %45 = math.tanh %44 : vector<8x128xf32>
    %cst_14 = arith.constant 5.000000e-01 : f32
    %46 = vector.broadcast %cst_14 : f32 to vector<8x128xf32>
    %47 = arith.mulf %46, %45 : vector<8x128xf32>
    %cst_15 = arith.constant 5.000000e-01 : f32
    %48 = vector.broadcast %cst_15 : f32 to vector<8x128xf32>
    %49 = arith.addf %47, %48 : vector<8x128xf32>
    %c96_i32_16 = arith.constant 96 : i32
    %50 = tpu.dynamic_rotate %49 by %c96_i32_16 dim 1 : vector<8x128xf32>, i32 -> vector<8x128xf32>
    %c64_i32_17 = arith.constant 64 : i32
    %51 = tpu.dynamic_rotate %45 by %c64_i32_17 dim 1 : vector<8x128xf32>, i32 -> vector<8x128xf32>
    %c32_i32_18 = arith.constant 32 : i32
    %52 = tpu.dynamic_rotate %49 by %c32_i32_18 dim 1 : vector<8x128xf32>, i32 -> vector<8x128xf32>
    %53 = arith.mulf %50, %37 : vector<8x128xf32>
    %54 = arith.mulf %49, %51 : vector<8x128xf32>
    %55 = arith.addf %53, %54 : vector<8x128xf32>
    %56 = math.tanh %55 : vector<8x128xf32>
    %57 = arith.mulf %52, %56 : vector<8x128xf32>
    %c1_i32 = arith.constant 1 : i32
    %58 = vector.broadcast %c1_i32 : i32 to vector<8x1xi32>
    %59 = arith.cmpi sgt, %1, %58 : vector<8x1xi32>
    %60 = vector.shape_cast %59 : vector<8x1xi1> to vector<8x1xi1>
    %61 = vector.broadcast %60 : vector<8x1xi1> to vector<8x128xi1>
    %62 = arith.select %61, %55, %37 : vector<8x128xi1>, vector<8x128xf32>
    %63 = vector.shape_cast %59 : vector<8x1xi1> to vector<8x1xi1>
    %64 = vector.broadcast %63 : vector<8x1xi1> to vector<8x128xi1>
    %65 = arith.select %64, %57, %40 : vector<8x128xi1>, vector<8x128xf32>
    %66 = vector.extract_strided_slice %11 {offsets = [16, 0], sizes = [8, 128], strides = [1, 1]} : vector<64x128xf32> to vector<8x128xf32>
    %67 = arith.truncf %65 : vector<8x128xf32> to vector<8x128xbf16>
    %cst_19 = arith.constant dense<0.000000e+00> : vector<8x128xf32>
    %68 = tpu.matmul %67, %13, %cst_19 {dimension_numbers = #tpu.dot_dimension_numbers<[1], [0], [0], [1], [0, 0, 1, 1], [], []>} : vector<8x128xbf16>, vector<128x128xbf16>, vector<8x128xf32> -> vector<8x128xf32>
    %69 = arith.addf %66, %68 : vector<8x128xf32>
    %70 = math.tanh %69 : vector<8x128xf32>
    %cst_20 = arith.constant 5.000000e-01 : f32
    %71 = vector.broadcast %cst_20 : f32 to vector<8x128xf32>
    %72 = arith.mulf %71, %70 : vector<8x128xf32>
    %cst_21 = arith.constant 5.000000e-01 : f32
    %73 = vector.broadcast %cst_21 : f32 to vector<8x128xf32>
    %74 = arith.addf %72, %73 : vector<8x128xf32>
    %c96_i32_22 = arith.constant 96 : i32
    %75 = tpu.dynamic_rotate %74 by %c96_i32_22 dim 1 : vector<8x128xf32>, i32 -> vector<8x128xf32>
    %c64_i32_23 = arith.constant 64 : i32
    %76 = tpu.dynamic_rotate %70 by %c64_i32_23 dim 1 : vector<8x128xf32>, i32 -> vector<8x128xf32>
    %c32_i32_24 = arith.constant 32 : i32
    %77 = tpu.dynamic_rotate %74 by %c32_i32_24 dim 1 : vector<8x128xf32>, i32 -> vector<8x128xf32>
    %78 = arith.mulf %75, %62 : vector<8x128xf32>
    %79 = arith.mulf %74, %76 : vector<8x128xf32>
    %80 = arith.addf %78, %79 : vector<8x128xf32>
    %81 = math.tanh %80 : vector<8x128xf32>
    %82 = arith.mulf %77, %81 : vector<8x128xf32>
    %c2_i32 = arith.constant 2 : i32
    %83 = vector.broadcast %c2_i32 : i32 to vector<8x1xi32>
    %84 = arith.cmpi sgt, %1, %83 : vector<8x1xi32>
    %85 = vector.shape_cast %84 : vector<8x1xi1> to vector<8x1xi1>
    %86 = vector.broadcast %85 : vector<8x1xi1> to vector<8x128xi1>
    %87 = arith.select %86, %80, %62 : vector<8x128xi1>, vector<8x128xf32>
    %88 = vector.shape_cast %84 : vector<8x1xi1> to vector<8x1xi1>
    %89 = vector.broadcast %88 : vector<8x1xi1> to vector<8x128xi1>
    %90 = arith.select %89, %82, %65 : vector<8x128xi1>, vector<8x128xf32>
    %91 = vector.extract_strided_slice %11 {offsets = [24, 0], sizes = [8, 128], strides = [1, 1]} : vector<64x128xf32> to vector<8x128xf32>
    %92 = arith.truncf %90 : vector<8x128xf32> to vector<8x128xbf16>
    %cst_25 = arith.constant dense<0.000000e+00> : vector<8x128xf32>
    %93 = tpu.matmul %92, %13, %cst_25 {dimension_numbers = #tpu.dot_dimension_numbers<[1], [0], [0], [1], [0, 0, 1, 1], [], []>} : vector<8x128xbf16>, vector<128x128xbf16>, vector<8x128xf32> -> vector<8x128xf32>
    %94 = arith.addf %91, %93 : vector<8x128xf32>
    %95 = math.tanh %94 : vector<8x128xf32>
    %cst_26 = arith.constant 5.000000e-01 : f32
    %96 = vector.broadcast %cst_26 : f32 to vector<8x128xf32>
    %97 = arith.mulf %96, %95 : vector<8x128xf32>
    %cst_27 = arith.constant 5.000000e-01 : f32
    %98 = vector.broadcast %cst_27 : f32 to vector<8x128xf32>
    %99 = arith.addf %97, %98 : vector<8x128xf32>
    %c96_i32_28 = arith.constant 96 : i32
    %100 = tpu.dynamic_rotate %99 by %c96_i32_28 dim 1 : vector<8x128xf32>, i32 -> vector<8x128xf32>
    %c64_i32_29 = arith.constant 64 : i32
    %101 = tpu.dynamic_rotate %95 by %c64_i32_29 dim 1 : vector<8x128xf32>, i32 -> vector<8x128xf32>
    %c32_i32_30 = arith.constant 32 : i32
    %102 = tpu.dynamic_rotate %99 by %c32_i32_30 dim 1 : vector<8x128xf32>, i32 -> vector<8x128xf32>
    %103 = arith.mulf %100, %87 : vector<8x128xf32>
    %104 = arith.mulf %99, %101 : vector<8x128xf32>
    %105 = arith.addf %103, %104 : vector<8x128xf32>
    %106 = math.tanh %105 : vector<8x128xf32>
    %107 = arith.mulf %102, %106 : vector<8x128xf32>
    %c3_i32 = arith.constant 3 : i32
    %108 = vector.broadcast %c3_i32 : i32 to vector<8x1xi32>
    %109 = arith.cmpi sgt, %1, %108 : vector<8x1xi32>
    %110 = vector.shape_cast %109 : vector<8x1xi1> to vector<8x1xi1>
    %111 = vector.broadcast %110 : vector<8x1xi1> to vector<8x128xi1>
    %112 = arith.select %111, %105, %87 : vector<8x128xi1>, vector<8x128xf32>
    %113 = vector.shape_cast %109 : vector<8x1xi1> to vector<8x1xi1>
    %114 = vector.broadcast %113 : vector<8x1xi1> to vector<8x128xi1>
    %115 = arith.select %114, %107, %90 : vector<8x128xi1>, vector<8x128xf32>
    %116 = vector.extract_strided_slice %11 {offsets = [32, 0], sizes = [8, 128], strides = [1, 1]} : vector<64x128xf32> to vector<8x128xf32>
    %117 = arith.truncf %115 : vector<8x128xf32> to vector<8x128xbf16>
    %cst_31 = arith.constant dense<0.000000e+00> : vector<8x128xf32>
    %118 = tpu.matmul %117, %13, %cst_31 {dimension_numbers = #tpu.dot_dimension_numbers<[1], [0], [0], [1], [0, 0, 1, 1], [], []>} : vector<8x128xbf16>, vector<128x128xbf16>, vector<8x128xf32> -> vector<8x128xf32>
    %119 = arith.addf %116, %118 : vector<8x128xf32>
    %120 = math.tanh %119 : vector<8x128xf32>
    %cst_32 = arith.constant 5.000000e-01 : f32
    %121 = vector.broadcast %cst_32 : f32 to vector<8x128xf32>
    %122 = arith.mulf %121, %120 : vector<8x128xf32>
    %cst_33 = arith.constant 5.000000e-01 : f32
    %123 = vector.broadcast %cst_33 : f32 to vector<8x128xf32>
    %124 = arith.addf %122, %123 : vector<8x128xf32>
    %c96_i32_34 = arith.constant 96 : i32
    %125 = tpu.dynamic_rotate %124 by %c96_i32_34 dim 1 : vector<8x128xf32>, i32 -> vector<8x128xf32>
    %c64_i32_35 = arith.constant 64 : i32
    %126 = tpu.dynamic_rotate %120 by %c64_i32_35 dim 1 : vector<8x128xf32>, i32 -> vector<8x128xf32>
    %c32_i32_36 = arith.constant 32 : i32
    %127 = tpu.dynamic_rotate %124 by %c32_i32_36 dim 1 : vector<8x128xf32>, i32 -> vector<8x128xf32>
    %128 = arith.mulf %125, %112 : vector<8x128xf32>
    %129 = arith.mulf %124, %126 : vector<8x128xf32>
    %130 = arith.addf %128, %129 : vector<8x128xf32>
    %131 = math.tanh %130 : vector<8x128xf32>
    %132 = arith.mulf %127, %131 : vector<8x128xf32>
    %c4_i32 = arith.constant 4 : i32
    %133 = vector.broadcast %c4_i32 : i32 to vector<8x1xi32>
    %134 = arith.cmpi sgt, %1, %133 : vector<8x1xi32>
    %135 = vector.shape_cast %134 : vector<8x1xi1> to vector<8x1xi1>
    %136 = vector.broadcast %135 : vector<8x1xi1> to vector<8x128xi1>
    %137 = arith.select %136, %130, %112 : vector<8x128xi1>, vector<8x128xf32>
    %138 = vector.shape_cast %134 : vector<8x1xi1> to vector<8x1xi1>
    %139 = vector.broadcast %138 : vector<8x1xi1> to vector<8x128xi1>
    %140 = arith.select %139, %132, %115 : vector<8x128xi1>, vector<8x128xf32>
    %141 = vector.extract_strided_slice %11 {offsets = [40, 0], sizes = [8, 128], strides = [1, 1]} : vector<64x128xf32> to vector<8x128xf32>
    %142 = arith.truncf %140 : vector<8x128xf32> to vector<8x128xbf16>
    %cst_37 = arith.constant dense<0.000000e+00> : vector<8x128xf32>
    %143 = tpu.matmul %142, %13, %cst_37 {dimension_numbers = #tpu.dot_dimension_numbers<[1], [0], [0], [1], [0, 0, 1, 1], [], []>} : vector<8x128xbf16>, vector<128x128xbf16>, vector<8x128xf32> -> vector<8x128xf32>
    %144 = arith.addf %141, %143 : vector<8x128xf32>
    %145 = math.tanh %144 : vector<8x128xf32>
    %cst_38 = arith.constant 5.000000e-01 : f32
    %146 = vector.broadcast %cst_38 : f32 to vector<8x128xf32>
    %147 = arith.mulf %146, %145 : vector<8x128xf32>
    %cst_39 = arith.constant 5.000000e-01 : f32
    %148 = vector.broadcast %cst_39 : f32 to vector<8x128xf32>
    %149 = arith.addf %147, %148 : vector<8x128xf32>
    %c96_i32_40 = arith.constant 96 : i32
    %150 = tpu.dynamic_rotate %149 by %c96_i32_40 dim 1 : vector<8x128xf32>, i32 -> vector<8x128xf32>
    %c64_i32_41 = arith.constant 64 : i32
    %151 = tpu.dynamic_rotate %145 by %c64_i32_41 dim 1 : vector<8x128xf32>, i32 -> vector<8x128xf32>
    %c32_i32_42 = arith.constant 32 : i32
    %152 = tpu.dynamic_rotate %149 by %c32_i32_42 dim 1 : vector<8x128xf32>, i32 -> vector<8x128xf32>
    %153 = arith.mulf %150, %137 : vector<8x128xf32>
    %154 = arith.mulf %149, %151 : vector<8x128xf32>
    %155 = arith.addf %153, %154 : vector<8x128xf32>
    %156 = math.tanh %155 : vector<8x128xf32>
    %157 = arith.mulf %152, %156 : vector<8x128xf32>
    %c5_i32 = arith.constant 5 : i32
    %158 = vector.broadcast %c5_i32 : i32 to vector<8x1xi32>
    %159 = arith.cmpi sgt, %1, %158 : vector<8x1xi32>
    %160 = vector.shape_cast %159 : vector<8x1xi1> to vector<8x1xi1>
    %161 = vector.broadcast %160 : vector<8x1xi1> to vector<8x128xi1>
    %162 = arith.select %161, %155, %137 : vector<8x128xi1>, vector<8x128xf32>
    %163 = vector.shape_cast %159 : vector<8x1xi1> to vector<8x1xi1>
    %164 = vector.broadcast %163 : vector<8x1xi1> to vector<8x128xi1>
    %165 = arith.select %164, %157, %140 : vector<8x128xi1>, vector<8x128xf32>
    %166 = vector.extract_strided_slice %11 {offsets = [48, 0], sizes = [8, 128], strides = [1, 1]} : vector<64x128xf32> to vector<8x128xf32>
    %167 = arith.truncf %165 : vector<8x128xf32> to vector<8x128xbf16>
    %cst_43 = arith.constant dense<0.000000e+00> : vector<8x128xf32>
    %168 = tpu.matmul %167, %13, %cst_43 {dimension_numbers = #tpu.dot_dimension_numbers<[1], [0], [0], [1], [0, 0, 1, 1], [], []>} : vector<8x128xbf16>, vector<128x128xbf16>, vector<8x128xf32> -> vector<8x128xf32>
    %169 = arith.addf %166, %168 : vector<8x128xf32>
    %170 = math.tanh %169 : vector<8x128xf32>
    %cst_44 = arith.constant 5.000000e-01 : f32
    %171 = vector.broadcast %cst_44 : f32 to vector<8x128xf32>
    %172 = arith.mulf %171, %170 : vector<8x128xf32>
    %cst_45 = arith.constant 5.000000e-01 : f32
    %173 = vector.broadcast %cst_45 : f32 to vector<8x128xf32>
    %174 = arith.addf %172, %173 : vector<8x128xf32>
    %c96_i32_46 = arith.constant 96 : i32
    %175 = tpu.dynamic_rotate %174 by %c96_i32_46 dim 1 : vector<8x128xf32>, i32 -> vector<8x128xf32>
    %c64_i32_47 = arith.constant 64 : i32
    %176 = tpu.dynamic_rotate %170 by %c64_i32_47 dim 1 : vector<8x128xf32>, i32 -> vector<8x128xf32>
    %c32_i32_48 = arith.constant 32 : i32
    %177 = tpu.dynamic_rotate %174 by %c32_i32_48 dim 1 : vector<8x128xf32>, i32 -> vector<8x128xf32>
    %178 = arith.mulf %175, %162 : vector<8x128xf32>
    %179 = arith.mulf %174, %176 : vector<8x128xf32>
    %180 = arith.addf %178, %179 : vector<8x128xf32>
    %181 = math.tanh %180 : vector<8x128xf32>
    %182 = arith.mulf %177, %181 : vector<8x128xf32>
    %c6_i32 = arith.constant 6 : i32
    %183 = vector.broadcast %c6_i32 : i32 to vector<8x1xi32>
    %184 = arith.cmpi sgt, %1, %183 : vector<8x1xi32>
    %185 = vector.shape_cast %184 : vector<8x1xi1> to vector<8x1xi1>
    %186 = vector.broadcast %185 : vector<8x1xi1> to vector<8x128xi1>
    %187 = arith.select %186, %180, %162 : vector<8x128xi1>, vector<8x128xf32>
    %188 = vector.shape_cast %184 : vector<8x1xi1> to vector<8x1xi1>
    %189 = vector.broadcast %188 : vector<8x1xi1> to vector<8x128xi1>
    %190 = arith.select %189, %182, %165 : vector<8x128xi1>, vector<8x128xf32>
    %191 = vector.extract_strided_slice %11 {offsets = [56, 0], sizes = [8, 128], strides = [1, 1]} : vector<64x128xf32> to vector<8x128xf32>
    %192 = arith.truncf %190 : vector<8x128xf32> to vector<8x128xbf16>
    %cst_49 = arith.constant dense<0.000000e+00> : vector<8x128xf32>
    %193 = tpu.matmul %192, %13, %cst_49 {dimension_numbers = #tpu.dot_dimension_numbers<[1], [0], [0], [1], [0, 0, 1, 1], [], []>} : vector<8x128xbf16>, vector<128x128xbf16>, vector<8x128xf32> -> vector<8x128xf32>
    %194 = arith.addf %191, %193 : vector<8x128xf32>
    %195 = math.tanh %194 : vector<8x128xf32>
    %cst_50 = arith.constant 5.000000e-01 : f32
    %196 = vector.broadcast %cst_50 : f32 to vector<8x128xf32>
    %197 = arith.mulf %196, %195 : vector<8x128xf32>
    %cst_51 = arith.constant 5.000000e-01 : f32
    %198 = vector.broadcast %cst_51 : f32 to vector<8x128xf32>
    %199 = arith.addf %197, %198 : vector<8x128xf32>
    %c96_i32_52 = arith.constant 96 : i32
    %200 = tpu.dynamic_rotate %199 by %c96_i32_52 dim 1 : vector<8x128xf32>, i32 -> vector<8x128xf32>
    %c64_i32_53 = arith.constant 64 : i32
    %201 = tpu.dynamic_rotate %195 by %c64_i32_53 dim 1 : vector<8x128xf32>, i32 -> vector<8x128xf32>
    %c32_i32_54 = arith.constant 32 : i32
    %202 = tpu.dynamic_rotate %199 by %c32_i32_54 dim 1 : vector<8x128xf32>, i32 -> vector<8x128xf32>
    %203 = arith.mulf %200, %187 : vector<8x128xf32>
    %204 = arith.mulf %199, %201 : vector<8x128xf32>
    %205 = arith.addf %203, %204 : vector<8x128xf32>
    %206 = math.tanh %205 : vector<8x128xf32>
    %207 = arith.mulf %202, %206 : vector<8x128xf32>
    %c7_i32 = arith.constant 7 : i32
    %208 = vector.broadcast %c7_i32 : i32 to vector<8x1xi32>
    %209 = arith.cmpi sgt, %1, %208 : vector<8x1xi32>
    %210 = vector.shape_cast %209 : vector<8x1xi1> to vector<8x1xi1>
    %211 = vector.broadcast %210 : vector<8x1xi1> to vector<8x128xi1>
    %212 = arith.select %211, %207, %190 : vector<8x128xi1>, vector<8x128xf32>
    %c1 = arith.constant 1 : index
    %c0_55 = arith.constant 0 : index
    %213 = vector.load %arg3[%c1, %c0_55] : memref<8x128xf32, #tpu.memory_space<vmem>>, vector<1x128xf32>
    %c2 = arith.constant 2 : index
    %c0_56 = arith.constant 0 : index
    %214 = vector.load %arg3[%c2, %c0_56] : memref<8x128xf32, #tpu.memory_space<vmem>>, vector<1x1xf32>
    %215 = vector.broadcast %213 : vector<1x128xf32> to vector<8x128xf32>
    %216 = arith.mulf %212, %215 : vector<8x128xf32>
    %cst_57 = arith.constant dense<0.000000e+00> : vector<8xf32>
    %217 = vector.multi_reduction <add>, %216, %cst_57 [1] : vector<8x128xf32> to vector<8xf32>
    %218 = vector.shape_cast %217 : vector<8xf32> to vector<8x1xf32>
    %219 = vector.broadcast %214 : vector<1x1xf32> to vector<8x1xf32>
    %220 = arith.addf %218, %219 : vector<8x1xf32>
    %c0_58 = arith.constant 0 : index
    %c0_59 = arith.constant 0 : index
    %221 = vector.load %arg4[%c0_58, %c0_59] : memref<8x1xf32, #tpu.memory_space<vmem>>, vector<8x1xf32>
    tpu.vector_store %arg4[%c0_58, %c0_59], %220 {strides = array<i32>} : memref<8x1xf32, #tpu.memory_space<vmem>>, vector<8x1xf32>,
    return
  }
}

</mosaic_0001>

<llo_original>
// kernel: tpu_custom_call.1
$region0: #{tpu_custom_call.1}
  #allocation0 [shape = 'u32[]', space=smem, size = 0x4, offset = 0x4, fixed_abs, tag = 'smem constant byte address 0x4 - core index']
  #allocation1 [shape = 'u32[144,128]{1,0:T(1,128)}', space=vmem, size = 0x12000, scoped, tag = 'internal scratch']
  %s0 = inlined_call_operand.vmem [shape: s32[72,1], index: 0, kind: input, shape index: {}]
  %s1 = inlined_call_operand.vmem [shape: f32[20,128], index: 1, kind: input, shape index: {}]
  %s2 = inlined_call_operand.hbm [shape: f32[128,128], index: 2, kind: input, shape index: {}]
  %s3 = inlined_call_operand.vmem [shape: f32[8,128], index: 3, kind: input, shape index: {}]
  %s4 = inlined_call_operand.vmem [shape: f32[8,1], index: 4, kind: output, shape index: {}]
  %s5 = sld [smem:[#allocation0]]
  $region30: #{tpu_custom_call.1} parent=0
    _
  %s7 = ssub.s32 1, %s5
  %s8 = scalar_select 0, %s7, %s5
  $region1: #{tpu_custom_call.1} parent=0
    #allocation2 [shape = 'u8[65536]{0}', space=vmem, size = 0x10000, scoped, tag = 'input window, operand 2, single buffered']
    #allocation3 [shape = 's32[1]{0}', space=sflag, size = 0x4, scoped, tag = 'scoped memory for tpu_custom_call.1']
    %9 = vsyncpa [#allocation3], 0
    // Predicated region
    $region2: #{tpu_custom_call.1} parent=1 // pred_check
      _
    $region3: #{tpu_custom_call.1} parent=1 // pred_check_branch
      %11 = sbr.rel (0) target = $region5
    $region4: #{tpu_custom_call.1} parent=1 // pred_region
      _
    $region5: #{tpu_custom_call.1} parent=1 // pred_fallthru
      _
    // Predicated region
    $region6: #{tpu_custom_call.1} parent=1 // pred_check
      _
    $region7: #{tpu_custom_call.1} parent=1 // pred_check_branch
      %13 = sbr.rel (0) target = $region9
    $region8: #{tpu_custom_call.1} parent=1 // pred_region
      _
    $region9: #{tpu_custom_call.1} parent=1 // pred_fallthru
      _
    // Predicated region
    $region10: #{tpu_custom_call.1} parent=1 // pred_check
      _
    $region11: #{tpu_custom_call.1} parent=1 // pred_check_branch
      %15 = sbr.rel (0) target = $region13
    $region12: #{tpu_custom_call.1} parent=1 // pred_region
      %s17 = ssub.s32 2048, 2048
      %18 = vsyncadd [#allocation3], %s17
      %s19 = sshll.u32 [#allocation2], 4
      %s20 = int_to_ptr.vmem [resolvable:$true] %s19
      %25 = dma.hbm_to_vmem [thread:$0]  %s2, 2048, %s20, [#allocation3], 128, 128, 8
    $region13: #{tpu_custom_call.1} parent=1 // pred_fallthru
      _
    // Predicated region
    $region14: #{tpu_custom_call.1} parent=1 // pred_check
      _
    $region15: #{tpu_custom_call.1} parent=1 // pred_check_branch
      %27 = sbr.rel (0) target = $region17
    $region16: #{tpu_custom_call.1} parent=1 // pred_region
      _
    $region17: #{tpu_custom_call.1} parent=1 // pred_fallthru
      _
    // Predicated region
    $region18: #{tpu_custom_call.1} parent=1 // pred_check
      _
    $region19: #{tpu_custom_call.1} parent=1 // pred_check_branch
      %29 = sbr.rel (0) target = $region21
    $region20: #{tpu_custom_call.1} parent=1 // pred_region
      %30 = dma.done [#allocation3], 2048
    $region21: #{tpu_custom_call.1} parent=1 // pred_fallthru
      _
    %v32 = vld [vmem:[%s0] sm:$0xff]
    %v33 = vld [vmem:[%s0 + $0x8] sm:$0xff]
    %v34 = vld [vmem:[%s0 + $0x10] sm:$0xff]
    %v35 = vld [vmem:[%s0 + $0x18] sm:$0xff]
    %v36 = vld [vmem:[%s0 + $0x20] sm:$0xff]
    %v37 = vld [vmem:[%s0 + $0x28] sm:$0xff]
    %v38 = vld [vmem:[%s0 + $0x30] sm:$0xff]
    %v39 = vld [vmem:[%s0 + $0x38] sm:$0xff]
    %v40 = vld [vmem:[%s0 + $0x40] sm:$0xff]
    %v41 = vlaneseq
    %v42 = vand.u32 %v41, 127
    %43 = vset.pattern.permute.xlu0 0
    %44 = vperm.xlu0 %43, %v32
    %v45 = vpop.permute.xlu0 %44
    %46 = vset.pattern.permute.xlu0 0
    %47 = vperm.xlu0 %46, %v33
    %v48 = vpop.permute.xlu0 %47
    %49 = vset.pattern.permute.xlu0 0
    %50 = vperm.xlu0 %49, %v34
    %v51 = vpop.permute.xlu0 %50
    %52 = vset.pattern.permute.xlu0 0
    %53 = vperm.xlu0 %52, %v35
    %v54 = vpop.permute.xlu0 %53
    %55 = vset.pattern.permute.xlu0 0
    %56 = vperm.xlu0 %55, %v36
    %v57 = vpop.permute.xlu0 %56
    %58 = vset.pattern.permute.xlu0 0
    %59 = vperm.xlu0 %58, %v37
    %v60 = vpop.permute.xlu0 %59
    %61 = vset.pattern.permute.xlu0 0
    %62 = vperm.xlu0 %61, %v38
    %v63 = vpop.permute.xlu0 %62
    %64 = vset.pattern.permute.xlu0 0
    %65 = vperm.xlu0 %64, %v39
    %v66 = vpop.permute.xlu0 %65
    %vm67 = vcmp.eq.s32.totalorder %v45, %v42
    %vm68 = vcmp.eq.s32.totalorder %v48, %v42
    %vm69 = vcmp.eq.s32.totalorder %v51, %v42
    %vm70 = vcmp.eq.s32.totalorder %v54, %v42
    %vm71 = vcmp.eq.s32.totalorder %v57, %v42
    %vm72 = vcmp.eq.s32.totalorder %v60, %v42
    %vm73 = vcmp.eq.s32.totalorder %v63, %v42
    %vm74 = vcmp.eq.s32.totalorder %v66, %v42
    %v75 = vsel %vm67, 1, 0
    %v76 = vsel %vm68, 1, 0
    %v77 = vsel %vm69, 1, 0
    %v78 = vsel %vm70, 1, 0
    %v79 = vsel %vm71, 1, 0
    %v80 = vsel %vm72, 1, 0
    %v81 = vsel %vm73, 1, 0
    %v82 = vsel %vm74, 1, 0
    %v83 = vcvt.s32.f32 %v75
    %v84 = vcvt.s32.f32 %v76
    %v85 = vcvt.s32.f32 %v77
    %v86 = vcvt.s32.f32 %v78
    %v87 = vcvt.s32.f32 %v79
    %v88 = vcvt.s32.f32 %v80
    %v89 = vcvt.s32.f32 %v81
    %v90 = vcvt.s32.f32 %v82
    %v91 = vld [vmem:[%s3] sm:$0x1]
    %v92 = vld [vmem:[%s1] sm:$0xff]
    %v93 = vld [vmem:[%s1 + $0x8] sm:$0xff]
    %v94 = vld [vmem:[%s1 + $0x10] sm:$0xf]
    %v95 = vlaneseq
    %v96 = vshrl.u32 %v95, 7
    %v97 = vsub.s32 0, %v96
    %v98 = vrot.slane %v91, %v97
    %vm99 = vcmask 162816
    %v101 = vsel %vm99, %v83, 0
    %v104 = vsel %vm99, %v84, 0
    %v107 = vsel %vm99, %v85, 0
    %v110 = vsel %vm99, %v86, 0
    %v113 = vsel %vm99, %v87, 0
    %v116 = vsel %vm99, %v88, 0
    %v119 = vsel %vm99, %v89, 0
    %v122 = vsel %vm99, %v90, 0
    %vm124 = vcmask 1043456
    %v126 = vsel %vm124, %v94, 0
    %128 = vmatprep.subr.mxu0 0.0
    %129 = vmatpush1.msra.mxu0 %v92
    %130 = vmatprep.subr.mxu0 0.0
    %131 = vmatpush1.msra.mxu0 %v93
    %132 = vmatprep.subr.mxu0 0.0
    %133 = vmatpush1.msra.mxu0 %v126
    %134 = vmatprep.subr.mxu0 0.0
    %135 = vmatpush1.msra.mxu0 0.0
    %136 = vmatprep.subr.mxu0 0.0
    %137 = vmatpush1.msra.mxu0 0.0
    %138 = vmatprep.subr.mxu0 0.0
    %139 = vmatpush1.msra.mxu0 0.0
    %140 = vmatprep.subr.mxu0 0.0
    %141 = vmatpush1.msra.mxu0 0.0
    %142 = vmatprep.subr.mxu0 0.0
    %143 = vmatpush1.msra.mxu0 0.0
    %144 = vmatprep.subr.mxu0 0.0
    %145 = vmatpush1.msra.mxu0 0.0
    %146 = vmatprep.subr.mxu0 0.0
    %147 = vmatpush1.msra.mxu0 0.0
    %148 = vmatprep.subr.mxu0 0.0
    %149 = vmatpush1.msra.mxu0 0.0
    %150 = vmatprep.subr.mxu0 0.0
    %151 = vmatpush1.msra.mxu0 0.0
    %152 = vmatprep.subr.mxu0 0.0
    %153 = vmatpush1.msra.mxu0 0.0
    %154 = vmatprep.subr.mxu0 0.0
    %155 = vmatpush1.msra.mxu0 0.0
    %156 = vmatprep.subr.mxu0 0.0
    %157 = vmatpush1.msra.mxu0 0.0
    %158 = vmatprep.subr.mxu0 0.0
    %159 = vmatpush1.msra.mxu0 0.0
    %160 = vmatprep.subr.mxu0 0.0
    %161 = vmatpush1.msra.mxu0 0.0
    %162 = vmatprep.subr.mxu0 0.0
    %163 = vmatpush1.msra.mxu0 0.0
    %164 = vmatprep.subr.mxu0 0.0
    %165 = vmatpush1.msra.mxu0 0.0
    %166 = vmatprep.subr.mxu0 0.0
    %167 = vmatpush1.msra.mxu0 0.0
    %168 = vmatprep.subr.mxu0 0.0
    %169 = vmatpush1.msra.mxu0 0.0
    %170 = vmatprep.subr.mxu0 0.0
    %171 = vmatpush1.msra.mxu0 0.0
    %172 = vmatprep.subr.mxu0 0.0
    %173 = vmatpush1.msra.mxu0 0.0
    %174 = vmatprep.subr.mxu0 0.0
    %175 = vmatpush1.msra.mxu0 0.0
    %176 = vmatprep.subr.mxu0 0.0
    %177 = vmatpush1.msra.mxu0 0.0
    %178 = vmatprep.subr.mxu0 0.0
    %179 = vmatpush1.msra.mxu0 0.0
    %180 = vmatprep.subr.mxu0 0.0
    %181 = vmatpush1.msra.mxu0 0.0
    %182 = vmatprep.subr.mxu0 0.0
    %183 = vmatpush1.msra.mxu0 0.0
    %184 = vmatprep.subr.mxu0 0.0
    %185 = vmatpush1.msra.mxu0 0.0
    %186 = vmatprep.subr.mxu0 0.0
    %187 = vmatpush1.msra.mxu0 0.0
    %188 = vmatprep.subr.mxu0 0.0
    %189 = vmatpush1.msra.mxu0 0.0
    %190 = vmatprep.subr.mxu0 0.0
    %191 = vmatpush1.msra.mxu0 0.0
    %192 = vmatprep.mubr.f32.mxu0 0.0
    %193 = vmatmul.mubr.f32.gmra.mrb[0].mxu0 %v101
    %v194 = vpop.f32.mrb[0].mxu0
    %v195 = vadd.f32 %v98, %v194
    %v196 = vpop.f32.mrb[0].mxu0
    %197 = vmatprep.mubr.f32.mxu0 0.0
    %198 = vmatmul.mubr.f32.gmra.mrb[0].mxu0 %v104
    %v199 = vpop.f32.mrb[0].mxu0
    %v200 = vadd.f32 %v98, %v199
    %v201 = vpop.f32.mrb[0].mxu0
    %202 = vmatprep.mubr.f32.mxu0 0.0
    %203 = vmatmul.mubr.f32.gmra.mrb[0].mxu0 %v107
    %v204 = vpop.f32.mrb[0].mxu0
    %v205 = vadd.f32 %v98, %v204
    %v206 = vpop.f32.mrb[0].mxu0
    %207 = vmatprep.mubr.f32.mxu0 0.0
    %208 = vmatmul.mubr.f32.gmra.mrb[0].mxu0 %v110
    %v209 = vpop.f32.mrb[0].mxu0
    %v210 = vadd.f32 %v98, %v209
    %v211 = vpop.f32.mrb[0].mxu0
    %212 = vmatprep.mubr.f32.mxu0 0.0
    %213 = vmatmul.mubr.f32.gmra.mrb[0].mxu0 %v113
    %v214 = vpop.f32.mrb[0].mxu0
    %v215 = vadd.f32 %v98, %v214
    %v216 = vpop.f32.mrb[0].mxu0
    %217 = vmatprep.mubr.f32.mxu0 0.0
    %218 = vmatmul.mubr.f32.gmra.mrb[0].mxu0 %v116
    %v219 = vpop.f32.mrb[0].mxu0
    %v220 = vadd.f32 %v98, %v219
    %v221 = vpop.f32.mrb[0].mxu0
    %222 = vmatprep.mubr.f32.mxu0 0.0
    %223 = vmatmul.mubr.f32.gmra.mrb[0].mxu0 %v119
    %v224 = vpop.f32.mrb[0].mxu0
    %v225 = vadd.f32 %v98, %v224
    %v226 = vpop.f32.mrb[0].mxu0
    %227 = vmatprep.mubr.f32.mxu0 0.0
    %228 = vmatmul.mubr.f32.gmra.mrb[0].mxu0 %v122
    %v229 = vpop.f32.mrb[0].mxu0
    %v230 = vadd.f32 %v98, %v229
    %v231 = vpop.f32.mrb[0].mxu0
    %232 = vdwg.mxu0
    %v233 = vld [vmem:[#allocation2] sm:$0xff]
    %v234 = vld [vmem:[#allocation2 + $0x8] sm:$0xff]
    %v235 = vld [vmem:[#allocation2 + $0x10] sm:$0xff]
    %v236 = vld [vmem:[#allocation2 + $0x18] sm:$0xff]
    %v237 = vld [vmem:[#allocation2 + $0x20] sm:$0xff]
    %v238 = vld [vmem:[#allocation2 + $0x28] sm:$0xff]
    %v239 = vld [vmem:[#allocation2 + $0x30] sm:$0xff]
    %v240 = vld [vmem:[#allocation2 + $0x38] sm:$0xff]
    %v241 = vld [vmem:[#allocation2 + $0x40] sm:$0xff]
    %v242 = vld [vmem:[#allocation2 + $0x48] sm:$0xff]
    %v243 = vld [vmem:[#allocation2 + $0x50] sm:$0xff]
    %v244 = vld [vmem:[#allocation2 + $0x58] sm:$0xff]
    %v245 = vld [vmem:[#allocation2 + $0x60] sm:$0xff]
    %v246 = vld [vmem:[#allocation2 + $0x68] sm:$0xff]
    %v247 = vld [vmem:[#allocation2 + $0x70] sm:$0xff]
    %v248 = vld [vmem:[#allocation2 + $0x78] sm:$0xff]
    %v249 = vpack.c.bf16 %v234, %v233
    %v250 = vpack.c.bf16 %v236, %v235
    %v251 = vpack.c.bf16 %v238, %v237
    %v252 = vpack.c.bf16 %v240, %v239
    %v253 = vpack.c.bf16 %v242, %v241
    %v254 = vpack.c.bf16 %v244, %v243
    %v255 = vpack.c.bf16 %v246, %v245
    %v256 = vpack.c.bf16 %v248, %v247
    %257 = vmatprep.subr.bf16.mxu0 0
    %258 = vmatpush1.bf16.msra.mxu0 %v249
    %259 = vmatprep.subr.bf16.mxu0 0
    %260 = vmatpush1.bf16.msra.mxu0 %v250
    %261 = vmatprep.subr.bf16.mxu0 0
    %262 = vmatpush1.bf16.msra.mxu0 %v251
    %263 = vmatprep.subr.bf16.mxu0 0
    %264 = vmatpush1.bf16.msra.mxu0 %v252
    %265 = vmatprep.subr.bf16.mxu0 0
    %266 = vmatpush1.bf16.msra.mxu0 %v253
    %267 = vmatprep.subr.bf16.mxu0 0
    %268 = vmatpush1.bf16.msra.mxu0 %v254
    %269 = vmatprep.subr.bf16.mxu0 0
    %270 = vmatpush1.bf16.msra.mxu0 %v255
    %271 = vmatprep.subr.bf16.mxu0 0
    %272 = vmatpush1.bf16.msra.mxu0 %v256
    %273 = vmatprep.subr.bf16.mxu0 0
    %274 = vmatpush1.bf16.msra.mxu0 0
    %275 = vmatprep.subr.bf16.mxu0 0
    %276 = vmatpush1.bf16.msra.mxu0 0
    %277 = vmatprep.subr.bf16.mxu0 0
    %278 = vmatpush1.bf16.msra.mxu0 0
    %279 = vmatprep.subr.bf16.mxu0 0
    %280 = vmatpush1.bf16.msra.mxu0 0
    %281 = vmatprep.subr.bf16.mxu0 0
    %282 = vmatpush1.bf16.msra.mxu0 0
    %283 = vmatprep.subr.bf16.mxu0 0
    %284 = vmatpush1.bf16.msra.mxu0 0
    %285 = vmatprep.subr.bf16.mxu0 0
    %286 = vmatpush1.bf16.msra.mxu0 0
    %287 = vmatprep.subr.bf16.mxu0 0
    %288 = vmatpush1.bf16.msra.mxu0 0
    %289 = vmatprep.mubr.bf16.mxu0 0
    %290 = vmatmul.mubr.bf16.gmra.mrb[0].mxu0 0
    %v291 = vpop.f32.mrb[0].mxu0
    %v292 = vadd.f32 0.0, %v291
    %v293 = vpop.f32.mrb[0].mxu0
    %v294 = vpop.f32.mrb[0].mxu0
    %v295 = vpop.f32.mrb[0].mxu0
    %296 = vdwg.mxu0
    %v297 = vadd.f32 %v195, %v292
    %v298 = vtanh.pop %v297
    %v299 = vmul.f32 %v298, 0.5
    %v300 = vadd.f32 %v299, 0.5
    %301 = vrot.lane.b32.xlu0 %v300, 96
    %v302 = vpop.permute.xlu0 %301
    %303 = vrot.lane.b32.xlu0 %v298, 64
    %v304 = vpop.permute.xlu0 %303
    %305 = vrot.lane.b32.xlu0 %v300, 32
    %v306 = vpop.permute.xlu0 %305
    %v307 = vmul.f32 %v302, 0.0
    %v308 = vmul.f32 %v300, %v304
    %v309 = vadd.f32 %v307, %v308
    %v310 = vtanh.pop %v309
    %v311 = vmul.f32 %v306, %v310
    %vm312 = vcmp.gt.s32.totalorder %v40, 0
    %v313 = vsel %vm312, 1, 0
    %314 = vset.pattern.permute.xlu0 0
    %315 = vperm.xlu0 %314, %v313
    %v316 = vpop.permute.xlu0 %315
    %vm317 = vcmp.eq.s32.totalorder %v316, 1
    %v318 = vsel %vm317, %v309, 0.0
    %v319 = vsel %vm317, %v311, 0.0
    %v320 = vpack.c.bf16 %v319, %v319
    %321 = vmatprep.subr.bf16.mxu0 0
    %322 = vmatpush1.bf16.msra.mxu0 %v249
    %323 = vmatprep.subr.bf16.mxu0 0
    %324 = vmatpush1.bf16.msra.mxu0 %v250
    %325 = vmatprep.subr.bf16.mxu0 0
    %326 = vmatpush1.bf16.msra.mxu0 %v251
    %327 = vmatprep.subr.bf16.mxu0 0
    %328 = vmatpush1.bf16.msra.mxu0 %v252
    %329 = vmatprep.subr.bf16.mxu0 0
    %330 = vmatpush1.bf16.msra.mxu0 %v253
    %331 = vmatprep.subr.bf16.mxu0 0
    %332 = vmatpush1.bf16.msra.mxu0 %v254
    %333 = vmatprep.subr.bf16.mxu0 0
    %334 = vmatpush1.bf16.msra.mxu0 %v255
    %335 = vmatprep.subr.bf16.mxu0 0
    %336 = vmatpush1.bf16.msra.mxu0 %v256
    %337 = vmatprep.subr.bf16.mxu0 0
    %338 = vmatpush1.bf16.msra.mxu0 0
    %339 = vmatprep.subr.bf16.mxu0 0
    %340 = vmatpush1.bf16.msra.mxu0 0
    %341 = vmatprep.subr.bf16.mxu0 0
    %342 = vmatpush1.bf16.msra.mxu0 0
    %343 = vmatprep.subr.bf16.mxu0 0
    %344 = vmatpush1.bf16.msra.mxu0 0
    %345 = vmatprep.subr.bf16.mxu0 0
    %346 = vmatpush1.bf16.msra.mxu0 0
    %347 = vmatprep.subr.bf16.mxu0 0
    %348 = vmatpush1.bf16.msra.mxu0 0
    %349 = vmatprep.subr.bf16.mxu0 0
    %350 = vmatpush1.bf16.msra.mxu0 0
    %351 = vmatprep.subr.bf16.mxu0 0
    %352 = vmatpush1.bf16.msra.mxu0 0
    %353 = vmatprep.mubr.bf16.mxu0 0
    %354 = vmatmul.mubr.bf16.gmra.mrb[0].mxu0 %v320
    %v355 = vpop.f32.mrb[0].mxu0
    %v356 = vadd.f32 0.0, %v355
    %v357 = vpop.f32.mrb[0].mxu0
    %v358 = vpop.f32.mrb[0].mxu0
    %v359 = vpop.f32.mrb[0].mxu0
    %360 = vdwg.mxu0
    %v361 = vadd.f32 %v200, %v356
    %v362 = vtanh.pop %v361
    %v363 = vmul.f32 %v362, 0.5
    %v364 = vadd.f32 %v363, 0.5
    %365 = vrot.lane.b32.xlu0 %v364, 96
    %v366 = vpop.permute.xlu0 %365
    %367 = vrot.lane.b32.xlu0 %v362, 64
    %v368 = vpop.permute.xlu0 %367
    %369 = vrot.lane.b32.xlu0 %v364, 32
    %v370 = vpop.permute.xlu0 %369
    %v371 = vmul.f32 %v366, %v318
    %v372 = vmul.f32 %v364, %v368
    %v373 = vadd.f32 %v371, %v372
    %v374 = vtanh.pop %v373
    %v375 = vmul.f32 %v370, %v374
    %vm376 = vcmp.gt.s32.totalorder %v40, 1
    %v377 = vsel %vm376, 1, 0
    %378 = vset.pattern.permute.xlu0 0
    %379 = vperm.xlu0 %378, %v377
    %v380 = vpop.permute.xlu0 %379
    %vm381 = vcmp.eq.s32.totalorder %v380, 1
    %v382 = vsel %vm381, %v373, %v318
    %v383 = vsel %vm381, %v375, %v319
    %v384 = vpack.c.bf16 %v383, %v383
    %385 = vmatprep.subr.bf16.mxu0 0
    %386 = vmatpush1.bf16.msra.mxu0 %v249
    %387 = vmatprep.subr.bf16.mxu0 0
    %388 = vmatpush1.bf16.msra.mxu0 %v250
    %389 = vmatprep.subr.bf16.mxu0 0
    %390 = vmatpush1.bf16.msra.mxu0 %v251
    %391 = vmatprep.subr.bf16.mxu0 0
    %392 = vmatpush1.bf16.msra.mxu0 %v252
    %393 = vmatprep.subr.bf16.mxu0 0
    %394 = vmatpush1.bf16.msra.mxu0 %v253
    %395 = vmatprep.subr.bf16.mxu0 0
    %396 = vmatpush1.bf16.msra.mxu0 %v254
    %397 = vmatprep.subr.bf16.mxu0 0
    %398 = vmatpush1.bf16.msra.mxu0 %v255
    %399 = vmatprep.subr.bf16.mxu0 0
    %400 = vmatpush1.bf16.msra.mxu0 %v256
    %401 = vmatprep.subr.bf16.mxu0 0
    %402 = vmatpush1.bf16.msra.mxu0 0
    %403 = vmatprep.subr.bf16.mxu0 0
    %404 = vmatpush1.bf16.msra.mxu0 0
    %405 = vmatprep.subr.bf16.mxu0 0
    %406 = vmatpush1.bf16.msra.mxu0 0
    %407 = vmatprep.subr.bf16.mxu0 0
    %408 = vmatpush1.bf16.msra.mxu0 0
    %409 = vmatprep.subr.bf16.mxu0 0
    %410 = vmatpush1.bf16.msra.mxu0 0
    %411 = vmatprep.subr.bf16.mxu0 0
    %412 = vmatpush1.bf16.msra.mxu0 0
    %413 = vmatprep.subr.bf16.mxu0 0
    %414 = vmatpush1.bf16.msra.mxu0 0
    %415 = vmatprep.subr.bf16.mxu0 0
    %416 = vmatpush1.bf16.msra.mxu0 0
    %417 = vmatprep.mubr.bf16.mxu0 0
    %418 = vmatmul.mubr.bf16.gmra.mrb[0].mxu0 %v384
    %v419 = vpop.f32.mrb[0].mxu0
    %v420 = vadd.f32 0.0, %v419
    %v421 = vpop.f32.mrb[0].mxu0
    %v422 = vpop.f32.mrb[0].mxu0
    %v423 = vpop.f32.mrb[0].mxu0
    %424 = vdwg.mxu0
    %v425 = vadd.f32 %v205, %v420
    %v426 = vtanh.pop %v425
    %v427 = vmul.f32 %v426, 0.5
    %v428 = vadd.f32 %v427, 0.5
    %429 = vrot.lane.b32.xlu0 %v428, 96
    %v430 = vpop.permute.xlu0 %429
    %431 = vrot.lane.b32.xlu0 %v426, 64
    %v432 = vpop.permute.xlu0 %431
    %433 = vrot.lane.b32.xlu0 %v428, 32
    %v434 = vpop.permute.xlu0 %433
    %v435 = vmul.f32 %v430, %v382
    %v436 = vmul.f32 %v428, %v432
    %v437 = vadd.f32 %v435, %v436
    %v438 = vtanh.pop %v437
    %v439 = vmul.f32 %v434, %v438
    %vm440 = vcmp.gt.s32.totalorder %v40, 2
    %v441 = vsel %vm440, 1, 0
    %442 = vset.pattern.permute.xlu0 0
    %443 = vperm.xlu0 %442, %v441
    %v444 = vpop.permute.xlu0 %443
    %vm445 = vcmp.eq.s32.totalorder %v444, 1
    %v446 = vsel %vm445, %v437, %v382
    %v447 = vsel %vm445, %v439, %v383
    %v448 = vpack.c.bf16 %v447, %v447
    %449 = vmatprep.subr.bf16.mxu0 0
    %450 = vmatpush1.bf16.msra.mxu0 %v249
    %451 = vmatprep.subr.bf16.mxu0 0
    %452 = vmatpush1.bf16.msra.mxu0 %v250
    %453 = vmatprep.subr.bf16.mxu0 0
    %454 = vmatpush1.bf16.msra.mxu0 %v251
    %455 = vmatprep.subr.bf16.mxu0 0
    %456 = vmatpush1.bf16.msra.mxu0 %v252
    %457 = vmatprep.subr.bf16.mxu0 0
    %458 = vmatpush1.bf16.msra.mxu0 %v253
    %459 = vmatprep.subr.bf16.mxu0 0
    %460 = vmatpush1.bf16.msra.mxu0 %v254
    %461 = vmatprep.subr.bf16.mxu0 0
    %462 = vmatpush1.bf16.msra.mxu0 %v255
    %463 = vmatprep.subr.bf16.mxu0 0
    %464 = vmatpush1.bf16.msra.mxu0 %v256
    %465 = vmatprep.subr.bf16.mxu0 0
    %466 = vmatpush1.bf16.msra.mxu0 0
    %467 = vmatprep.subr.bf16.mxu0 0
    %468 = vmatpush1.bf16.msra.mxu0 0
    %469 = vmatprep.subr.bf16.mxu0 0
    %470 = vmatpush1.bf16.msra.mxu0 0
    %471 = vmatprep.subr.bf16.mxu0 0
    %472 = vmatpush1.bf16.msra.mxu0 0
    %473 = vmatprep.subr.bf16.mxu0 0
    %474 = vmatpush1.bf16.msra.mxu0 0
    %475 = vmatprep.subr.bf16.mxu0 0
    %476 = vmatpush1.bf16.msra.mxu0 0
    %477 = vmatprep.subr.bf16.mxu0 0
    %478 = vmatpush1.bf16.msra.mxu0 0
    %479 = vmatprep.subr.bf16.mxu0 0
    %480 = vmatpush1.bf16.msra.mxu0 0
    %481 = vmatprep.mubr.bf16.mxu0 0
    %482 = vmatmul.mubr.bf16.gmra.mrb[0].mxu0 %v448
    %v483 = vpop.f32.mrb[0].mxu0
    %v484 = vadd.f32 0.0, %v483
    %v485 = vpop.f32.mrb[0].mxu0
    %v486 = vpop.f32.mrb[0].mxu0
    %v487 = vpop.f32.mrb[0].mxu0
    %488 = vdwg.mxu0
    %v489 = vadd.f32 %v210, %v484
    %v490 = vtanh.pop %v489
    %v491 = vmul.f32 %v490, 0.5
    %v492 = vadd.f32 %v491, 0.5
    %493 = vrot.lane.b32.xlu0 %v492, 96
    %v494 = vpop.permute.xlu0 %493
    %495 = vrot.lane.b32.xlu0 %v490, 64
    %v496 = vpop.permute.xlu0 %495
    %497 = vrot.lane.b32.xlu0 %v492, 32
    %v498 = vpop.permute.xlu0 %497
    %v499 = vmul.f32 %v494, %v446
    %v500 = vmul.f32 %v492, %v496
    %v501 = vadd.f32 %v499, %v500
    %v502 = vtanh.pop %v501
    %v503 = vmul.f32 %v498, %v502
    %vm504 = vcmp.gt.s32.totalorder %v40, 3
    %v505 = vsel %vm504, 1, 0
    %506 = vset.pattern.permute.xlu0 0
    %507 = vperm.xlu0 %506, %v505
    %v508 = vpop.permute.xlu0 %507
    %vm509 = vcmp.eq.s32.totalorder %v508, 1
    %v510 = vsel %vm509, %v501, %v446
    %v511 = vsel %vm509, %v503, %v447
    %v512 = vpack.c.bf16 %v511, %v511
    %513 = vmatprep.subr.bf16.mxu0 0
    %514 = vmatpush1.bf16.msra.mxu0 %v249
    %515 = vmatprep.subr.bf16.mxu0 0
    %516 = vmatpush1.bf16.msra.mxu0 %v250
    %517 = vmatprep.subr.bf16.mxu0 0
    %518 = vmatpush1.bf16.msra.mxu0 %v251
    %519 = vmatprep.subr.bf16.mxu0 0
    %520 = vmatpush1.bf16.msra.mxu0 %v252
    %521 = vmatprep.subr.bf16.mxu0 0
    %522 = vmatpush1.bf16.msra.mxu0 %v253
    %523 = vmatprep.subr.bf16.mxu0 0
    %524 = vmatpush1.bf16.msra.mxu0 %v254
    %525 = vmatprep.subr.bf16.mxu0 0
    %526 = vmatpush1.bf16.msra.mxu0 %v255
    %527 = vmatprep.subr.bf16.mxu0 0
    %528 = vmatpush1.bf16.msra.mxu0 %v256
    %529 = vmatprep.subr.bf16.mxu0 0
    %530 = vmatpush1.bf16.msra.mxu0 0
    %531 = vmatprep.subr.bf16.mxu0 0
    %532 = vmatpush1.bf16.msra.mxu0 0
    %533 = vmatprep.subr.bf16.mxu0 0
    %534 = vmatpush1.bf16.msra.mxu0 0
    %535 = vmatprep.subr.bf16.mxu0 0
    %536 = vmatpush1.bf16.msra.mxu0 0
    %537 = vmatprep.subr.bf16.mxu0 0
    %538 = vmatpush1.bf16.msra.mxu0 0
    %539 = vmatprep.subr.bf16.mxu0 0
    %540 = vmatpush1.bf16.msra.mxu0 0
    %541 = vmatprep.subr.bf16.mxu0 0
    %542 = vmatpush1.bf16.msra.mxu0 0
    %543 = vmatprep.subr.bf16.mxu0 0
    %544 = vmatpush1.bf16.msra.mxu0 0
    %545 = vmatprep.mubr.bf16.mxu0 0
    %546 = vmatmul.mubr.bf16.gmra.mrb[0].mxu0 %v512
    %v547 = vpop.f32.mrb[0].mxu0
    %v548 = vadd.f32 0.0, %v547
    %v549 = vpop.f32.mrb[0].mxu0
    %v550 = vpop.f32.mrb[0].mxu0
    %v551 = vpop.f32.mrb[0].mxu0
    %552 = vdwg.mxu0
    %v553 = vadd.f32 %v215, %v548
    %v554 = vtanh.pop %v553
    %v555 = vmul.f32 %v554, 0.5
    %v556 = vadd.f32 %v555, 0.5
    %557 = vrot.lane.b32.xlu0 %v556, 96
    %v558 = vpop.permute.xlu0 %557
    %559 = vrot.lane.b32.xlu0 %v554, 64
    %v560 = vpop.permute.xlu0 %559
    %561 = vrot.lane.b32.xlu0 %v556, 32
    %v562 = vpop.permute.xlu0 %561
    %v563 = vmul.f32 %v558, %v510
    %v564 = vmul.f32 %v556, %v560
    %v565 = vadd.f32 %v563, %v564
    %v566 = vtanh.pop %v565
    %v567 = vmul.f32 %v562, %v566
    %vm568 = vcmp.gt.s32.totalorder %v40, 4
    %v569 = vsel %vm568, 1, 0
    %570 = vset.pattern.permute.xlu0 0
    %571 = vperm.xlu0 %570, %v569
    %v572 = vpop.permute.xlu0 %571
    %vm573 = vcmp.eq.s32.totalorder %v572, 1
    %v574 = vsel %vm573, %v565, %v510
    %v575 = vsel %vm573, %v567, %v511
    %v576 = vpack.c.bf16 %v575, %v575
    %577 = vmatprep.subr.bf16.mxu0 0
    %578 = vmatpush1.bf16.msra.mxu0 %v249
    %579 = vmatprep.subr.bf16.mxu0 0
    %580 = vmatpush1.bf16.msra.mxu0 %v250
    %581 = vmatprep.subr.bf16.mxu0 0
    %582 = vmatpush1.bf16.msra.mxu0 %v251
    %583 = vmatprep.subr.bf16.mxu0 0
    %584 = vmatpush1.bf16.msra.mxu0 %v252
    %585 = vmatprep.subr.bf16.mxu0 0
    %586 = vmatpush1.bf16.msra.mxu0 %v253
    %587 = vmatprep.subr.bf16.mxu0 0
    %588 = vmatpush1.bf16.msra.mxu0 %v254
    %589 = vmatprep.subr.bf16.mxu0 0
    %590 = vmatpush1.bf16.msra.mxu0 %v255
    %591 = vmatprep.subr.bf16.mxu0 0
    %592 = vmatpush1.bf16.msra.mxu0 %v256
    %593 = vmatprep.subr.bf16.mxu0 0
    %594 = vmatpush1.bf16.msra.mxu0 0
    %595 = vmatprep.subr.bf16.mxu0 0
    %596 = vmatpush1.bf16.msra.mxu0 0
    %597 = vmatprep.subr.bf16.mxu0 0
    %598 = vmatpush1.bf16.msra.mxu0 0
    %599 = vmatprep.subr.bf16.mxu0 0
    %600 = vmatpush1.bf16.msra.mxu0 0
    %601 = vmatprep.subr.bf16.mxu0 0
    %602 = vmatpush1.bf16.msra.mxu0 0
    %603 = vmatprep.subr.bf16.mxu0 0
    %604 = vmatpush1.bf16.msra.mxu0 0
    %605 = vmatprep.subr.bf16.mxu0 0
    %606 = vmatpush1.bf16.msra.mxu0 0
    %607 = vmatprep.subr.bf16.mxu0 0
    %608 = vmatpush1.bf16.msra.mxu0 0
    %609 = vmatprep.mubr.bf16.mxu0 0
    %610 = vmatmul.mubr.bf16.gmra.mrb[0].mxu0 %v576
    %v611 = vpop.f32.mrb[0].mxu0
    %v612 = vadd.f32 0.0, %v611
    %v613 = vpop.f32.mrb[0].mxu0
    %v614 = vpop.f32.mrb[0].mxu0
    %v615 = vpop.f32.mrb[0].mxu0
    %616 = vdwg.mxu0
    %v617 = vadd.f32 %v220, %v612
    %v618 = vtanh.pop %v617
    %v619 = vmul.f32 %v618, 0.5
    %v620 = vadd.f32 %v619, 0.5
    %621 = vrot.lane.b32.xlu0 %v620, 96
    %v622 = vpop.permute.xlu0 %621
    %623 = vrot.lane.b32.xlu0 %v618, 64
    %v624 = vpop.permute.xlu0 %623
    %625 = vrot.lane.b32.xlu0 %v620, 32
    %v626 = vpop.permute.xlu0 %625
    %v627 = vmul.f32 %v622, %v574
    %v628 = vmul.f32 %v620, %v624
    %v629 = vadd.f32 %v627, %v628
    %v630 = vtanh.pop %v629
    %v631 = vmul.f32 %v626, %v630
    %vm632 = vcmp.gt.s32.totalorder %v40, 5
    %v633 = vsel %vm632, 1, 0
    %634 = vset.pattern.permute.xlu0 0
    %635 = vperm.xlu0 %634, %v633
    %v636 = vpop.permute.xlu0 %635
    %vm637 = vcmp.eq.s32.totalorder %v636, 1
    %v638 = vsel %vm637, %v629, %v574
    %v639 = vsel %vm637, %v631, %v575
    %v640 = vpack.c.bf16 %v639, %v639
    %641 = vmatprep.subr.bf16.mxu0 0
    %642 = vmatpush1.bf16.msra.mxu0 %v249
    %643 = vmatprep.subr.bf16.mxu0 0
    %644 = vmatpush1.bf16.msra.mxu0 %v250
    %645 = vmatprep.subr.bf16.mxu0 0
    %646 = vmatpush1.bf16.msra.mxu0 %v251
    %647 = vmatprep.subr.bf16.mxu0 0
    %648 = vmatpush1.bf16.msra.mxu0 %v252
    %649 = vmatprep.subr.bf16.mxu0 0
    %650 = vmatpush1.bf16.msra.mxu0 %v253
    %651 = vmatprep.subr.bf16.mxu0 0
    %652 = vmatpush1.bf16.msra.mxu0 %v254
    %653 = vmatprep.subr.bf16.mxu0 0
    %654 = vmatpush1.bf16.msra.mxu0 %v255
    %655 = vmatprep.subr.bf16.mxu0 0
    %656 = vmatpush1.bf16.msra.mxu0 %v256
    %657 = vmatprep.subr.bf16.mxu0 0
    %658 = vmatpush1.bf16.msra.mxu0 0
    %659 = vmatprep.subr.bf16.mxu0 0
    %660 = vmatpush1.bf16.msra.mxu0 0
    %661 = vmatprep.subr.bf16.mxu0 0
    %662 = vmatpush1.bf16.msra.mxu0 0
    %663 = vmatprep.subr.bf16.mxu0 0
    %664 = vmatpush1.bf16.msra.mxu0 0
    %665 = vmatprep.subr.bf16.mxu0 0
    %666 = vmatpush1.bf16.msra.mxu0 0
    %667 = vmatprep.subr.bf16.mxu0 0
    %668 = vmatpush1.bf16.msra.mxu0 0
    %669 = vmatprep.subr.bf16.mxu0 0
    %670 = vmatpush1.bf16.msra.mxu0 0
    %671 = vmatprep.subr.bf16.mxu0 0
    %672 = vmatpush1.bf16.msra.mxu0 0
    %673 = vmatprep.mubr.bf16.mxu0 0
    %674 = vmatmul.mubr.bf16.gmra.mrb[0].mxu0 %v640
    %v675 = vpop.f32.mrb[0].mxu0
    %v676 = vadd.f32 0.0, %v675
    %v677 = vpop.f32.mrb[0].mxu0
    %v678 = vpop.f32.mrb[0].mxu0
    %v679 = vpop.f32.mrb[0].mxu0
    %680 = vdwg.mxu0
    %v681 = vadd.f32 %v225, %v676
    %v682 = vtanh.pop %v681
    %v683 = vmul.f32 %v682, 0.5
    %v684 = vadd.f32 %v683, 0.5
    %685 = vrot.lane.b32.xlu0 %v684, 96
    %v686 = vpop.permute.xlu0 %685
    %687 = vrot.lane.b32.xlu0 %v682, 64
    %v688 = vpop.permute.xlu0 %687
    %689 = vrot.lane.b32.xlu0 %v684, 32
    %v690 = vpop.permute.xlu0 %689
    %v691 = vmul.f32 %v686, %v638
    %v692 = vmul.f32 %v684, %v688
    %v693 = vadd.f32 %v691, %v692
    %v694 = vtanh.pop %v693
    %v695 = vmul.f32 %v690, %v694
    %vm696 = vcmp.gt.s32.totalorder %v40, 6
    %v697 = vsel %vm696, 1, 0
    %698 = vset.pattern.permute.xlu0 0
    %699 = vperm.xlu0 %698, %v697
    %v700 = vpop.permute.xlu0 %699
    %vm701 = vcmp.eq.s32.totalorder %v700, 1
    %v702 = vsel %vm701, %v693, %v638
    %v703 = vsel %vm701, %v695, %v639
    %v704 = vpack.c.bf16 %v703, %v703
    %705 = vmatprep.subr.bf16.mxu0 0
    %706 = vmatpush1.bf16.msra.mxu0 %v249
    %707 = vmatprep.subr.bf16.mxu0 0
    %708 = vmatpush1.bf16.msra.mxu0 %v250
    %709 = vmatprep.subr.bf16.mxu0 0
    %710 = vmatpush1.bf16.msra.mxu0 %v251
    %711 = vmatprep.subr.bf16.mxu0 0
    %712 = vmatpush1.bf16.msra.mxu0 %v252
    %713 = vmatprep.subr.bf16.mxu0 0
    %714 = vmatpush1.bf16.msra.mxu0 %v253
    %715 = vmatprep.subr.bf16.mxu0 0
    %716 = vmatpush1.bf16.msra.mxu0 %v254
    %717 = vmatprep.subr.bf16.mxu0 0
    %718 = vmatpush1.bf16.msra.mxu0 %v255
    %719 = vmatprep.subr.bf16.mxu0 0
    %720 = vmatpush1.bf16.msra.mxu0 %v256
    %721 = vmatprep.subr.bf16.mxu0 0
    %722 = vmatpush1.bf16.msra.mxu0 0
    %723 = vmatprep.subr.bf16.mxu0 0
    %724 = vmatpush1.bf16.msra.mxu0 0
    %725 = vmatprep.subr.bf16.mxu0 0
    %726 = vmatpush1.bf16.msra.mxu0 0
    %727 = vmatprep.subr.bf16.mxu0 0
    %728 = vmatpush1.bf16.msra.mxu0 0
    %729 = vmatprep.subr.bf16.mxu0 0
    %730 = vmatpush1.bf16.msra.mxu0 0
    %731 = vmatprep.subr.bf16.mxu0 0
    %732 = vmatpush1.bf16.msra.mxu0 0
    %733 = vmatprep.subr.bf16.mxu0 0
    %734 = vmatpush1.bf16.msra.mxu0 0
    %735 = vmatprep.subr.bf16.mxu0 0
    %736 = vmatpush1.bf16.msra.mxu0 0
    %737 = vmatprep.mubr.bf16.mxu0 0
    %738 = vmatmul.mubr.bf16.gmra.mrb[0].mxu0 %v704
    %v739 = vpop.f32.mrb[0].mxu0
    %v740 = vadd.f32 0.0, %v739
    %v741 = vpop.f32.mrb[0].mxu0
    %v742 = vpop.f32.mrb[0].mxu0
    %v743 = vpop.f32.mrb[0].mxu0
    %744 = vdwg.mxu0
    %v745 = vadd.f32 %v230, %v740
    %v746 = vtanh.pop %v745
    %v747 = vmul.f32 %v746, 0.5
    %v748 = vadd.f32 %v747, 0.5
    %749 = vrot.lane.b32.xlu0 %v748, 96
    %v750 = vpop.permute.xlu0 %749
    %751 = vrot.lane.b32.xlu0 %v746, 64
    %v752 = vpop.permute.xlu0 %751
    %753 = vrot.lane.b32.xlu0 %v748, 32
    %v754 = vpop.permute.xlu0 %753
    %v755 = vmul.f32 %v750, %v702
    %v756 = vmul.f32 %v748, %v752
    %v757 = vadd.f32 %v755, %v756
    %v758 = vtanh.pop %v757
    %v759 = vmul.f32 %v754, %v758
    %vm760 = vcmp.gt.s32.totalorder %v40, 7
    %v761 = vsel %vm760, 1, 0
    %762 = vset.pattern.permute.xlu0 0
    %763 = vperm.xlu0 %762, %v761
    %v764 = vpop.permute.xlu0 %763
    %vm765 = vcmp.eq.s32.totalorder %v764, 1
    %v766 = vsel %vm765, %v759, %v703
    %v767 = vld [vmem:[%s3 + $0x1] sm:$0x1]
    %v768 = vld [vmem:[%s3 + $0x2] sm:$0x1]
    %v769 = vlaneseq
    %v770 = vshrl.u32 %v769, 7
    %v771 = vsub.s32 0, %v770
    %v772 = vrot.slane %v767, %v771
    %v773 = vmul.f32 %v766, %v772
    %774 = vadd.xlane.f32.xlu0 %v773
    %v775 = vpop.xlane.xlu0 %774
    %v776 = vlaneseq
    %v777 = vshrl.u32 %v776, 7
    %v778 = vsub.s32 0, %v777
    %v779 = vrot.slane %v768, %v778
    %v780 = vadd.f32 %v775, %v779
    %vm781 = vcmask 7168
    %782 = vst.msk [vmem:[%s4] sm:$0xff] %vm781, %v780
    // Predicated region
    $region22: #{tpu_custom_call.1} parent=1 // pred_check
      _
    $region23: #{tpu_custom_call.1} parent=1 // pred_check_branch
      %784 = sbr.rel (0) target = $region25
    $region24: #{tpu_custom_call.1} parent=1 // pred_region
      _
    $region25: #{tpu_custom_call.1} parent=1 // pred_fallthru
      _
    // Predicated region
    $region26: #{tpu_custom_call.1} parent=1 // pred_check
      _
    $region27: #{tpu_custom_call.1} parent=1 // pred_check_branch
      %786 = sbr.rel (0) target = $region29
    $region28: #{tpu_custom_call.1} parent=1 // pred_region
      _
    $region29: #{tpu_custom_call.1} parent=1 // pred_fallthru
      _
    %787 = vsyncpa [#allocation3], 1

</llo_original>
